<compile_context>
chip_gen: v7x
topology: tpu7x:2x2x1
jax: 0.10.0
libtpu: 0.0.40
codegen_flags: <defaults>
</compile_context>

<pallas_src>
import jax
import jax.numpy as jnp
from jax.experimental import pallas as pl
from jax.experimental.pallas import tpu as pltpu

LRELU_SLOPE = 0.2
BN_EPS = 1e-5
_VMEM_LIMIT = 48 * 1024 * 1024


# ---------------------------------------------------------------------------
# Kernels
# ---------------------------------------------------------------------------
def _down_kernel(a_ref, wd_ref, h_ref):
    """LeakyReLU(0.2) -> 4x4/s2 conv (im2col matmul on the MXU) -> ReLU."""
    a = a_ref[...]
    a = jnp.where(a > 0, a, LRELU_SLOPE * a)            # LeakyReLU before the conv
    h = jnp.dot(a, wd_ref[...], preferred_element_type=jnp.float32,
                precision=jax.lax.Precision.HIGHEST)
    h_ref[...] = jnp.maximum(h, 0.0)                     # ReLU before the up-conv


def _up_stats_kernel(b_ref, wu_ref, y_ref, s1_ref, s2_ref):
    """Transposed conv as a phase-stacked matmul + global BN sum / sum-of-squares.

    s1/s2 map to the same block for every grid step (resident accumulators);
    the grid axis is a reduction and must be "arbitrary".
    """
    t = pl.program_id(0)
    y = jnp.dot(b_ref[...], wu_ref[...], preferred_element_type=jnp.float32,
                precision=jax.lax.Precision.HIGHEST)
    y_ref[...] = y

    @pl.when(t == 0)
    def _init():
        s1_ref[...] = jnp.zeros_like(s1_ref)
        s2_ref[...] = jnp.zeros_like(s2_ref)

    s1_ref[...] += jnp.sum(y, axis=0, keepdims=True)
    s2_ref[...] += jnp.sum(y * y, axis=0, keepdims=True)


def _bn_apply_kernel(y_ref, scale_ref, shift_ref, o_ref):
    """BatchNorm normalize + affine, folded to per-column scale/shift."""
    o_ref[...] = y_ref[...] * scale_ref[...] + shift_ref[...]


# ---------------------------------------------------------------------------
# Wrapper helpers (pure layout plumbing)
# ---------------------------------------------------------------------------
def _pick_tile(m, target):
    """Largest multiple-of-8 divisor of m that is <= target (else m itself)."""
    best = None
    t = 8
    while t <= min(target, m):
        if m % t == 0:
            best = t
        t += 8
    return best if best is not None else m


def _build_upconv_matrix(w_up):
    """(IC, OC, 4, 4) ConvTranspose2d weight -> (9*IC, 4*OC) phase-stacked matrix.

    Row block s = dy*3+dx corresponds to the neighbour inner[m+dy-1, n+dx-1];
    column block p = 2*py+px corresponds to output pixel (2m+py, 2n+px).
    For parity py and shift dy the contributing kernel tap is ky = 3 - 2*dy + py
    (zero block if out of range), and likewise for kx.
    """
    ic, oc = w_up.shape[0], w_up.shape[1]
    phases = [(0, 0), (0, 1), (1, 0), (1, 1)]
    rows = []
    for dy in range(3):
        for dx in range(3):
            cols = []
            for (py, px) in phases:
                ky = 3 - 2 * dy + py
                kx = 3 - 2 * dx + px
                if 0 <= ky <= 3 and 0 <= kx <= 3:
                    cols.append(w_up[:, :, ky, kx])                  # (IC, OC)
                else:
                    cols.append(jnp.zeros((ic, oc), w_up.dtype))
            rows.append(jnp.concatenate(cols, axis=1))               # (IC, 4*OC)
    return jnp.concatenate(rows, axis=0)                             # (9*IC, 4*OC)


# ---------------------------------------------------------------------------
# Forward pass
# ---------------------------------------------------------------------------
def unet_innermost_block(x_nchw, params, *, tile_m=512):
    """x_nchw: (N, Cin, H, W) f32. Returns cat([x, block(x)], channel) = (N, Cin+OC, H, W)."""
    w_down, w_up, gamma, beta = params
    n, cin, h, w = x_nchw.shape
    assert h % 2 == 0 and w % 2 == 0, "spatial dims must be even (k=4, s=2, p=1)"
    ic = w_down.shape[0]           # inner_nc  (Conv2d out-channels)
    assert w_down.shape[1] == cin
    oc = w_up.shape[1]             # outer_nc  (ConvTranspose2d out-channels)
    hi, wi = h // 2, w // 2
    m1 = n * hi * wi

    x_nhwc = jnp.transpose(x_nchw, (0, 2, 3, 1))

    # ---- layout: im2col for the 4x4/stride-2 down-conv (zero pad 1) ----
    xp = jnp.pad(x_nhwc, ((0, 0), (1, 1), (1, 1), (0, 0)))
    patches = [xp[:, ky:ky + 2 * hi:2, kx:kx + 2 * wi:2, :]
               for ky in range(4) for kx in range(4)]
    a_mat = jnp.concatenate(patches, axis=-1).reshape(m1, 16 * cin)
    # Conv2d weight (inner_nc, cin, 4, 4) -> (16*cin, inner_nc), row = (ky*4+kx)*cin + c
    wd_mat = jnp.transpose(w_down, (2, 3, 1, 0)).reshape(16 * cin, ic)

    tm = _pick_tile(m1, tile_m)
    grid = (m1 // tm,)
    cp_par = pltpu.CompilerParams(dimension_semantics=("parallel",),
                                  vmem_limit_bytes=_VMEM_LIMIT)
    cp_arb = pltpu.CompilerParams(dimension_semantics=("arbitrary",),
                                  vmem_limit_bytes=_VMEM_LIMIT)

    # ---- kernel 1: LeakyReLU + down-conv + ReLU ----
    inner_mat = pl.pallas_call(
        _down_kernel,
        out_shape=jax.ShapeDtypeStruct((m1, ic), jnp.float32),
        grid=grid,
        in_specs=[pl.BlockSpec((tm, 16 * cin), lambda i: (i, 0)),
                  pl.BlockSpec((16 * cin, ic), lambda i: (0, 0))],
        out_specs=pl.BlockSpec((tm, ic), lambda i: (i, 0)),
        compiler_params=cp_par,
    )(a_mat, wd_mat)

    # ---- layout: 3x3 neighbour gather of inner features (zero pad 1) ----
    inner_img = inner_mat.reshape(n, hi, wi, ic)
    ip = jnp.pad(inner_img, ((0, 0), (1, 1), (1, 1), (0, 0)))
    nbrs = [ip[:, dy:dy + hi, dx:dx + wi, :] for dy in range(3) for dx in range(3)]
    b_mat = jnp.concatenate(nbrs, axis=-1).reshape(m1, 9 * ic)
    wu_mat = _build_upconv_matrix(w_up)                              # (9*ic, 4*oc)

    # ---- kernel 2: transposed conv + global BN statistics (pass 1) ----
    y_mat, col_sum, col_sqsum = pl.pallas_call(
        _up_stats_kernel,
        out_shape=(jax.ShapeDtypeStruct((m1, 4 * oc), jnp.float32),
                   jax.ShapeDtypeStruct((1, 4 * oc), jnp.float32),
                   jax.ShapeDtypeStruct((1, 4 * oc), jnp.float32)),
        grid=grid,
        in_specs=[pl.BlockSpec((tm, 9 * ic), lambda i: (i, 0)),
                  pl.BlockSpec((9 * ic, 4 * oc), lambda i: (0, 0))],
        out_specs=(pl.BlockSpec((tm, 4 * oc), lambda i: (i, 0)),
                   pl.BlockSpec((1, 4 * oc), lambda i: (0, 0)),
                   pl.BlockSpec((1, 4 * oc), lambda i: (0, 0))),
        compiler_params=cp_arb,
    )(b_mat, wu_mat)

    # ---- O(C) BN finalize: fold the 4 sub-pixel phases, biased (training) variance ----
    count = float(n * h * w)
    ch_sum = jnp.sum(col_sum.reshape(4, oc), axis=0)
    ch_sq = jnp.sum(col_sqsum.reshape(4, oc), axis=0)
    mean = ch_sum / count
    var = jnp.maximum(ch_sq / count - mean * mean, 0.0)
    scale_c = gamma * jax.lax.rsqrt(var + BN_EPS)
    shift_c = beta - mean * scale_c
    scale_col = jnp.tile(scale_c, 4).reshape(1, 4 * oc)
    shift_col = jnp.tile(shift_c, 4).reshape(1, 4 * oc)

    # ---- kernel 3: apply BatchNorm (pass 2) ----
    y_norm = pl.pallas_call(
        _bn_apply_kernel,
        out_shape=jax.ShapeDtypeStruct((m1, 4 * oc), jnp.float32),
        grid=grid,
        in_specs=[pl.BlockSpec((tm, 4 * oc), lambda i: (i, 0)),
                  pl.BlockSpec((1, 4 * oc), lambda i: (0, 0)),
                  pl.BlockSpec((1, 4 * oc), lambda i: (0, 0))],
        out_specs=pl.BlockSpec((tm, 4 * oc), lambda i: (i, 0)),
        compiler_params=cp_par,
    )(y_mat, scale_col, shift_col)

    # ---- layout: interleave the 4 sub-pixel phases back to (N, OC, H, W), concat skip ----
    up = y_norm.reshape(n, hi, wi, 2, 2, oc)             # (n, m, wn, py, px, c)
    up = jnp.transpose(up, (0, 1, 3, 2, 4, 5)).reshape(n, h, w, oc)
    up = jnp.transpose(up, (0, 3, 1, 2))                 # NCHW
    return jnp.concatenate([x_nchw, up], axis=1)


# ---------------------------------------------------------------------------
# Parameters and pure-JAX reference
# ---------------------------------------------------------------------------
def make_params(key, outer_nc, inner_nc):
    """Synthetic parameters matching the PyTorch innermost block (input_nc=outer_nc)."""
    k1, k2, k3, k4 = jax.random.split(key, 4)
    scale = 0.1
    # Conv2d weight: (inner_nc, input_nc, 4, 4); ConvTranspose2d weight: (inner_nc, outer_nc, 4, 4)
    w_down = scale * jax.random.normal(k1, (inner_nc, outer_nc, 4, 4), jnp.float32)
    w_up = scale * jax.random.normal(k2, (inner_nc, outer_nc, 4, 4), jnp.float32)
    gamma = 1.0 + 0.1 * jax.random.normal(k3, (outer_nc,), jnp.float32)
    beta = 0.1 * jax.random.normal(k4, (outer_nc,), jnp.float32)
    return (w_down, w_up, gamma, beta)


def _reference(x_nchw, params):
    """Pure-JAX reference of the same forward (lax convolutions)."""
    w_down, w_up, gamma, beta = params
    hact = jnp.where(x_nchw > 0, x_nchw, LRELU_SLOPE * x_nchw)
    hdn = jax.lax.conv_general_dilated(
        hact, w_down, window_strides=(2, 2), padding=[(1, 1), (1, 1)],
        dimension_numbers=("NCHW", "OIHW", "NCHW"),
        precision=jax.lax.Precision.HIGHEST)
    hdn = jnp.maximum(hdn, 0.0)
    # ConvTranspose2d(s=2, p=1, k=4) == fractionally-strided conv with flipped kernel
    w_t = jnp.transpose(w_up[:, :, ::-1, ::-1], (1, 0, 2, 3))        # (OC, IC, 4, 4)
    hup = jax.lax.conv_general_dilated(
        hdn, w_t, window_strides=(1, 1), padding=[(2, 2), (2, 2)],
        lhs_dilation=(2, 2), dimension_numbers=("NCHW", "OIHW", "NCHW"),
        precision=jax.lax.Precision.HIGHEST)
    mean = jnp.mean(hup, axis=(0, 2, 3), keepdims=True)
    var = jnp.mean((hup - mean) ** 2, axis=(0, 2, 3), keepdims=True)
    hn = (hup - mean) * jax.lax.rsqrt(var + BN_EPS)
    hn = hn * gamma.reshape(1, -1, 1, 1) + beta.reshape(1, -1, 1, 1)
    return jnp.concatenate([x_nchw, hn], axis=1)


if __name__ == "__main__":
    key = jax.random.PRNGKey(0)
    kx, kp = jax.random.split(key)

    N, OUTER_NC, INNER_NC, H, W = 2, 4, 32, 16, 16
    x = jax.random.normal(kx, (N, OUTER_NC, H, W), jnp.float32)
    params = make_params(kp, OUTER_NC, INNER_NC)

    # tile_m=32 -> 4 grid steps at this toy size, exercising the pipelined grid
    # and the cross-tile BatchNorm statistics accumulation.
    out = unet_innermost_block(x, params, tile_m=32)
    out = jax.block_until_ready(out)
    assert out.shape == (N, 2 * OUTER_NC, H, W), out.shape

    ref = _reference(x, params)
    err = float(jnp.max(jnp.abs(out - ref)))
    assert jnp.allclose(out, ref, atol=2e-3, rtol=2e-3), err

    print("KERNEL_OK")
</pallas_src>

<mosaic_0001>
module attributes {stable_mosaic.version = 11 : i64} {
  func.func @_down_kernel(%arg0: i32, %arg1: memref<32x64xf32, #tpu.memory_space<vmem>>, %arg2: memref<64x32xf32, #tpu.memory_space<vmem>>, %arg3: memref<32x32xf32, #tpu.memory_space<vmem>>) attributes {dimension_semantics = [#tpu.dimension_semantics<parallel>], iteration_bounds = array<i64: 4>, scalar_prefetch = 0 : i64, scratch_operands = 0 : i64, tpu.core_type = #tpu.core_type<tc>, window_params = [{transform_indices = @transform_0, window_bounds = array<i64: 32, 64>}, {pipeline_mode = #tpu.pipeline_mode<synchronous>, transform_indices = @transform_1, window_bounds = array<i64: 64, 32>}, {transform_indices = @transform_2, window_bounds = array<i64: 32, 32>}]} {
    %c0 = arith.constant 0 : index
    %c0_0 = arith.constant 0 : index
    %0 = vector.load %arg1[%c0, %c0_0] : memref<32x64xf32, #tpu.memory_space<vmem>>, vector<32x64xf32>
    %cst = arith.constant 0.000000e+00 : f32
    %1 = vector.broadcast %cst : f32 to vector<32x64xf32>
    %2 = arith.cmpf ogt, %0, %1 : vector<32x64xf32>
    %cst_1 = arith.constant 2.000000e-01 : f32
    %3 = vector.broadcast %cst_1 : f32 to vector<32x64xf32>
    %4 = arith.mulf %3, %0 : vector<32x64xf32>
    %5 = arith.select %2, %0, %4 : vector<32x64xi1>, vector<32x64xf32>
    %c0_2 = arith.constant 0 : index
    %c0_3 = arith.constant 0 : index
    %6 = vector.load %arg2[%c0_2, %c0_3] : memref<64x32xf32, #tpu.memory_space<vmem>>, vector<64x32xf32>
    %cst_4 = arith.constant dense<0.000000e+00> : vector<32x32xf32>
    %7 = tpu.matmul %5, %6, %cst_4 {dimension_numbers = #tpu.dot_dimension_numbers<[1], [0], [0], [1], [0, 0, 1, 1], [], []>, precision = #tpu.contract_precision<fp32>} : vector<32x64xf32>, vector<64x32xf32>, vector<32x32xf32> -> vector<32x32xf32>
    %cst_5 = arith.constant 0.000000e+00 : f32
    %8 = vector.broadcast %cst_5 : f32 to vector<32x32xf32>
    %9 = arith.maximumf %7, %8 : vector<32x32xf32>
    %c0_6 = arith.constant 0 : index
    %c0_7 = arith.constant 0 : index
    %10 = vector.load %arg3[%c0_6, %c0_7] : memref<32x32xf32, #tpu.memory_space<vmem>>, vector<32x32xf32>
    tpu.vector_store %arg3[%c0_6, %c0_7], %9 {strides = array<i32>} : memref<32x32xf32, #tpu.memory_space<vmem>>, vector<32x32xf32>,
    return
  }
  func.func @transform_0(%arg0: i32) -> (i32, i32) {
    %c0_i32 = arith.constant 0 : i32
    %c0_i32_0 = arith.constant 0 : i32
    return %arg0, %c0_i32 : i32, i32
  }
  func.func @transform_1(%arg0: i32) -> (i32, i32) {
    %c0_i32 = arith.constant 0 : i32
    %c0_i32_0 = arith.constant 0 : i32
    %c0_i32_1 = arith.constant 0 : i32
    return %c0_i32, %c0_i32_0 : i32, i32
  }
  func.func @transform_2(%arg0: i32) -> (i32, i32) {
    %c0_i32 = arith.constant 0 : i32
    %c0_i32_0 = arith.constant 0 : i32
    return %arg0, %c0_i32 : i32, i32
  }
}

</mosaic_0001>

<llo_original>
// kernel: tpu_custom_call.1
$region0: #{tpu_custom_call.1}
  #allocation0 [shape = 'u32[]', space=smem, size = 0x4, offset = 0x4, fixed_abs, tag = 'smem constant byte address 0x4 - core index']
  #allocation1 [shape = 'u32[144,128]{1,0:T(1,128)}', space=vmem, size = 0x12000, scoped, tag = 'internal scratch']
  %s0 = inlined_call_operand.vmem [shape: f32[128,64], index: 0, kind: input, shape index: {}]
  %s1 = inlined_call_operand.vmem [shape: f32[64,32], index: 1, kind: input, shape index: {}]
  %s2 = inlined_call_operand.vmem [shape: f32[128,32], index: 2, kind: output, shape index: {}]
  %s3 = sld [smem:[#allocation0]]
  $region41: #{tpu_custom_call.1} parent=0
    _
  %s5 = ssub.s32 1, %s3
  %s6 = scalar_select 0, %s5, %s3
  loop: start=0, step=1, limit=6
  $region2: #{tpu_custom_call.1} parent=0 // loop_pre_header
    _
  $region3: #{tpu_custom_call.1} parent=0 // loop_header
    %s8 = sphi 0, %s12
    %p9 = scmp.ge.s32.totalorder %s8, 6
    %s18 = sphi 0, %s20
    %s21 = sphi 0, %s18
    %s22 = sphi 0, %s21
    %s38 = sphi 0, %s22
    %s42 = sphi 0, %s42
    %s44 = sphi 0, %s42
    %s45 = sphi 0, %s44
    %s59 = sphi 0, %s45
    %s65 = sphi 0, %s67
    %s68 = sphi 0, %s65
    %s69 = sphi 0, %s68
    %s85 = sphi 0, %s69
  $region4: #{tpu_custom_call.1} parent=0 // loop_header_branch
    %11 = sbr.rel (%p9) target = $region8
  $region5: #{tpu_custom_call.1} parent=0 // loop_body
    %s13 = ssub.s32 %s8, 1
    %s14 = ssub.s32 %s8, 2
    %s15 = sadd.s32 %s8, 1
    %s16 = ssub.s32 %s8, %s15
    %p17 = scmp.eq.s32.totalorder %s16, 0
    %s19 = sadd.s32 %s18, 1
    %s20 = scalar_select %p17, %s18, %s19
    %p23 = pneg %p17
    %p24 = scmp.eq.s32.totalorder %s8, 3
    %p25 = por %p23, %p24
    %p26 = scmp.ne.s32.totalorder %s18, %s21
    %p27 = scmp.eq.s32.totalorder %s8, 0
    %p28 = por %p26, %p27
    %p29 = scmp.ne.s32.totalorder %s18, %s21
    %p30 = scmp.eq.s32.totalorder %s13, 3
    %p31 = por %p29, %p30
    %p32 = scmp.ne.s32.totalorder %s21, %s22
    %p33 = scmp.eq.s32.totalorder %s13, 0
    %p34 = por %p32, %p33
    %p35 = scmp.ne.s32.totalorder %s21, %s22
    %p36 = scmp.eq.s32.totalorder %s14, 3
    %p37 = por %p35, %p36
    %p39 = scmp.ne.s32.totalorder %s22, %s38
    %p40 = scmp.eq.s32.totalorder %s14, 0
    %p41 = por %p39, %p40
    %s43 = sadd.s32 %s42, 1
    %p46 = scmp.eq.s32.totalorder %s8, 3
    %p47 = scmp.ne.s32.totalorder %s42, %s44
    %p48 = scmp.eq.s32.totalorder %s8, 0
    %p49 = por %p47, %p48
    %p50 = scmp.ne.s32.totalorder %s42, %s44
    %p51 = scmp.eq.s32.totalorder %s13, 3
    %p52 = por %p50, %p51
    %p53 = scmp.ne.s32.totalorder %s44, %s45
    %p54 = scmp.eq.s32.totalorder %s13, 0
    %p55 = por %p53, %p54
    %p56 = scmp.ne.s32.totalorder %s44, %s45
    %p57 = scmp.eq.s32.totalorder %s14, 3
    %p58 = por %p56, %p57
    %p60 = scmp.ne.s32.totalorder %s45, %s59
    %p61 = scmp.eq.s32.totalorder %s14, 0
    %p62 = por %p60, %p61
    %s63 = ssub.s32 %s8, %s15
    %p64 = scmp.eq.s32.totalorder %s63, 0
    %s66 = sadd.s32 %s65, 1
    %s67 = scalar_select %p64, %s65, %s66
    %p70 = pneg %p64
    %p71 = scmp.eq.s32.totalorder %s8, 3
    %p72 = por %p70, %p71
    %p73 = scmp.ne.s32.totalorder %s65, %s68
    %p74 = scmp.eq.s32.totalorder %s8, 0
    %p75 = por %p73, %p74
    %p76 = scmp.ne.s32.totalorder %s65, %s68
    %p77 = scmp.eq.s32.totalorder %s13, 3
    %p78 = por %p76, %p77
    %p79 = scmp.ne.s32.totalorder %s68, %s69
    %p80 = scmp.eq.s32.totalorder %s13, 0
    %p81 = por %p79, %p80
    %p82 = scmp.ne.s32.totalorder %s68, %s69
    %p83 = scmp.eq.s32.totalorder %s14, 3
    %p84 = por %p82, %p83
    %p86 = scmp.ne.s32.totalorder %s69, %s85
    %p87 = scmp.eq.s32.totalorder %s14, 0
    %p88 = por %p86, %p87
    %p89 = scmp.le.s32.totalorder 1, %s8
    %p90 = scmp.lt.s32.totalorder %s8, 5
    %p91 = pnand %p89, %p90
    %p92 = pneg %p91
    // Predicated region
    $region9: #{tpu_custom_call.1} parent=5 // pred_check
      _
    $region10: #{tpu_custom_call.1} parent=5 // pred_check_branch
      %94 = sbr.rel (%p91) target = $region12
    $region11: #{tpu_custom_call.1} parent=5 // pred_region
      %s95 = ssub.s32 %s8, 1
      // Predicated region
      $region13: #{tpu_custom_call.1} parent=11 // pred_check
        %p96 = pneg %p55
      $region14: #{tpu_custom_call.1} parent=11 // pred_check_branch
        %98 = sbr.rel (%p96) target = $region16
      $region15: #{tpu_custom_call.1} parent=11 // pred_region
        _
      $region16: #{tpu_custom_call.1} parent=11 // pred_fallthru
        _
    $region12: #{tpu_custom_call.1} parent=5 // pred_fallthru
      _
    %p99 = scmp.lt.s32.totalorder %s8, 4
    // Predicated region
    $region17: #{tpu_custom_call.1} parent=5 // pred_check
      %p100 = pneg %p99
    $region18: #{tpu_custom_call.1} parent=5 // pred_check_branch
      %102 = sbr.rel (%p100) target = $region20
    $region19: #{tpu_custom_call.1} parent=5 // pred_region
      // Predicated region
      $region21: #{tpu_custom_call.1} parent=19 // pred_check
        %p103 = pneg %p28
      $region22: #{tpu_custom_call.1} parent=19 // pred_check_branch
        %105 = sbr.rel (%p103) target = $region24
      $region23: #{tpu_custom_call.1} parent=19 // pred_region
        %s106 = smul.u32 4, %s8
        %p107 = scmp.lt.s32.totalorder %s106, 15
        %s108 = scalar_select %p107, %s106, 15
        %s109 = smul.addr %s108, 8
        %s110 = scalar_lea.vmem %s0, %s109
        %s111 = smul.u32 4, %s8
      $region24: #{tpu_custom_call.1} parent=19 // pred_fallthru
        _
    $region20: #{tpu_custom_call.1} parent=5 // pred_fallthru
      _
    %p112 = scmp.le.s32.totalorder 1, %s8
    %p113 = scmp.lt.s32.totalorder %s8, 5
    %p114 = pnand %p112, %p113
    %p115 = pneg %p114
    // Predicated region
    $region25: #{tpu_custom_call.1} parent=5 // pred_check
      _
    $region26: #{tpu_custom_call.1} parent=5 // pred_check_branch
      %117 = sbr.rel (%p114) target = $region28
    $region27: #{tpu_custom_call.1} parent=5 // pred_region
      %s118 = ssub.s32 %s8, 1
      %s119 = smul.u32 4, %s13
      %p120 = scmp.lt.s32.totalorder %s119, 15
      %s121 = scalar_select %p120, %s119, 15
      %s122 = smul.addr %s121, 8
      %s123 = scalar_lea.vmem %s0, %s122
      %p124 = pneg %p34
      %p125 = pneg %p31
      %p126 = pneg %p55
      %p127 = pneg %p52
      %p128 = pneg %p81
      %p129 = pneg %p78
      %s130 = smul.u32 4, %s13
      %p131 = scmp.lt.s32.totalorder %s130, 15
      %s132 = scalar_select %p131, %s130, 15
      %s133 = smul.addr %s132, 8
      %s134 = scalar_lea.vmem %s2, %s133
      %s135 = smul.u32 4, %s13
      %p136 = scmp.lt.s32.totalorder %s135, 15
      %s137 = scalar_select %p136, %s135, 15
      %s138 = smul.addr %s137, 8
      %s139 = scalar_lea.vmem %s0, %s138
      %s140 = smul.u32 4, %s13
      %s141 = smul.u32 4, %s13
      %p142 = scmp.lt.s32.totalorder %s141, 15
      %s143 = scalar_select %p142, %s141, 15
      %s144 = smul.addr %s143, 8
      %s145 = scalar_lea.vmem %s2, %s144
      %s146 = smul.u32 4, %s13
      %v147 = vld [vmem:[%s139] sm:$0xff]
      %v148 = vld [vmem:[%s139 + $0x8] sm:$0xff]
      %v149 = vld [vmem:[%s139 + $0x10] sm:$0xff]
      %v150 = vld [vmem:[%s139 + $0x18] sm:$0xff]
      %vm151 = vcmp.gt.f32.partialorder %v147, 0.0
      %vm152 = vcmp.gt.f32.partialorder %v148, 0.0
      %vm153 = vcmp.gt.f32.partialorder %v149, 0.0
      %vm154 = vcmp.gt.f32.partialorder %v150, 0.0
      %v155 = vmul.f32 %v147, 0.2
      %v156 = vmul.f32 %v148, 0.2
      %v157 = vmul.f32 %v149, 0.2
      %v158 = vmul.f32 %v150, 0.2
      %v159 = vsel %vm151, %v147, %v155
      %v160 = vsel %vm152, %v148, %v156
      %v161 = vsel %vm153, %v149, %v157
      %v162 = vsel %vm154, %v150, %v158
      %v163 = vld [vmem:[%s1] sm:$0xff]
      %v164 = vld [vmem:[%s1 + $0x8] sm:$0xff]
      %v165 = vld [vmem:[%s1 + $0x10] sm:$0xff]
      %v166 = vld [vmem:[%s1 + $0x18] sm:$0xff]
      %v167 = vld [vmem:[%s1 + $0x20] sm:$0xff]
      %v168 = vld [vmem:[%s1 + $0x28] sm:$0xff]
      %v169 = vld [vmem:[%s1 + $0x30] sm:$0xff]
      %v170 = vld [vmem:[%s1 + $0x38] sm:$0xff]
      %vm171 = vcmask 523264
      %v173 = vsel %vm171, %v159, 0
      %v176 = vsel %vm171, %v160, 0
      %v179 = vsel %vm171, %v161, 0
      %v182 = vsel %vm171, %v162, 0
      %184 = vmatprep.subr.mxu0 0.0
      %v185 = vand.u32 %v163, 4294901760
      %186 = vmatpush1.msra.mxu0 %v185
      %187 = vmatprep.subr.mxu0 0.0
      %v188 = vand.u32 %v164, 4294901760
      %189 = vmatpush1.msra.mxu0 %v188
      %190 = vmatprep.subr.mxu0 0.0
      %v191 = vand.u32 %v165, 4294901760
      %192 = vmatpush1.msra.mxu0 %v191
      %193 = vmatprep.subr.mxu0 0.0
      %v194 = vand.u32 %v166, 4294901760
      %195 = vmatpush1.msra.mxu0 %v194
      %196 = vmatprep.subr.mxu0 0.0
      %v197 = vand.u32 %v167, 4294901760
      %198 = vmatpush1.msra.mxu0 %v197
      %199 = vmatprep.subr.mxu0 0.0
      %v200 = vand.u32 %v168, 4294901760
      %201 = vmatpush1.msra.mxu0 %v200
      %202 = vmatprep.subr.mxu0 0.0
      %v203 = vand.u32 %v169, 4294901760
      %204 = vmatpush1.msra.mxu0 %v203
      %205 = vmatprep.subr.mxu0 0.0
      %v206 = vand.u32 %v170, 4294901760
      %207 = vmatpush1.msra.mxu0 %v206
      %208 = vmatprep.subr.mxu0 0.0
      %209 = vmatpush1.msra.mxu0 0.0
      %210 = vmatprep.subr.mxu0 0.0
      %211 = vmatpush1.msra.mxu0 0.0
      %212 = vmatprep.subr.mxu0 0.0
      %213 = vmatpush1.msra.mxu0 0.0
      %214 = vmatprep.subr.mxu0 0.0
      %215 = vmatpush1.msra.mxu0 0.0
      %216 = vmatprep.subr.mxu0 0.0
      %217 = vmatpush1.msra.mxu0 0.0
      %218 = vmatprep.subr.mxu0 0.0
      %219 = vmatpush1.msra.mxu0 0.0
      %220 = vmatprep.subr.mxu0 0.0
      %221 = vmatpush1.msra.mxu0 0.0
      %222 = vmatprep.subr.mxu0 0.0
      %223 = vmatpush1.msra.mxu0 0.0
      %224 = vmatprep.subr.mxu0 0.0
      %225 = vmatpush1.msra.mxu0 0.0
      %226 = vmatprep.subr.mxu0 0.0
      %227 = vmatpush1.msra.mxu0 0.0
      %228 = vmatprep.subr.mxu0 0.0
      %229 = vmatpush1.msra.mxu0 0.0
      %230 = vmatprep.subr.mxu0 0.0
      %231 = vmatpush1.msra.mxu0 0.0
      %232 = vmatprep.subr.mxu0 0.0
      %233 = vmatpush1.msra.mxu0 0.0
      %234 = vmatprep.subr.mxu0 0.0
      %235 = vmatpush1.msra.mxu0 0.0
      %236 = vmatprep.subr.mxu0 0.0
      %237 = vmatpush1.msra.mxu0 0.0
      %238 = vmatprep.subr.mxu0 0.0
      %239 = vmatpush1.msra.mxu0 0.0
      %240 = vmatprep.subr.mxu0 0.0
      %241 = vmatpush1.msra.mxu0 0.0
      %242 = vmatprep.subr.mxu0 0.0
      %243 = vmatpush1.msra.mxu0 0.0
      %244 = vmatprep.subr.mxu0 0.0
      %245 = vmatpush1.msra.mxu0 0.0
      %246 = vmatprep.subr.mxu0 0.0
      %247 = vmatpush1.msra.mxu0 0.0
      %248 = vmatprep.subr.mxu0 0.0
      %249 = vmatpush1.msra.mxu0 0.0
      %250 = vmatprep.subr.mxu0 0.0
      %251 = vmatpush1.msra.mxu0 0.0
      %252 = vmatprep.subr.mxu0 0.0
      %253 = vmatpush1.msra.mxu0 0.0
      %254 = vmatprep.subr.mxu0 0.0
      %255 = vmatpush1.msra.mxu0 0.0
      %256 = vmatprep.mubr.f32.mxu0 0.0
      %v257 = vand.u32 %v173, 4294901760
      %v258 = vsub.f32 %v173, %v257
      %v259 = vand.u32 %v258, 4294901760
      %v260 = vsub.f32 %v258, %v259
      %v261 = vand.u32 %v260, 4294901760
      %262 = vmatmul.mubr.f32.gmra.mrb[0].mxu0 %v261
      %v263 = vpop.f32.mrb[0].mxu0
      %v264 = vadd.f32 0.0, %v263
      %v265 = vpop.f32.mrb[0].mxu0
      %266 = vmatprep.mubr.f32.mxu0 0.0
      %v267 = vand.u32 %v176, 4294901760
      %v268 = vsub.f32 %v176, %v267
      %v269 = vand.u32 %v268, 4294901760
      %v270 = vsub.f32 %v268, %v269
      %v271 = vand.u32 %v270, 4294901760
      %272 = vmatmul.mubr.f32.gmra.mrb[0].mxu0 %v271
      %v273 = vpop.f32.mrb[0].mxu0
      %v274 = vadd.f32 0.0, %v273
      %v275 = vpop.f32.mrb[0].mxu0
      %276 = vmatprep.mubr.f32.mxu0 0.0
      %v277 = vand.u32 %v179, 4294901760
      %v278 = vsub.f32 %v179, %v277
      %v279 = vand.u32 %v278, 4294901760
      %v280 = vsub.f32 %v278, %v279
      %v281 = vand.u32 %v280, 4294901760
      %282 = vmatmul.mubr.f32.gmra.mrb[0].mxu0 %v281
      %v283 = vpop.f32.mrb[0].mxu0
      %v284 = vadd.f32 0.0, %v283
      %v285 = vpop.f32.mrb[0].mxu0
      %286 = vmatprep.mubr.f32.mxu0 0.0
      %v287 = vand.u32 %v182, 4294901760
      %v288 = vsub.f32 %v182, %v287
      %v289 = vand.u32 %v288, 4294901760
      %v290 = vsub.f32 %v288, %v289
      %v291 = vand.u32 %v290, 4294901760
      %292 = vmatmul.mubr.f32.gmra.mrb[0].mxu0 %v291
      %v293 = vpop.f32.mrb[0].mxu0
      %v294 = vadd.f32 0.0, %v293
      %v295 = vpop.f32.mrb[0].mxu0
      %296 = vdwg.mxu0
      %297 = vmatprep.subr.mxu0 0.0
      %v298 = vand.u32 %v163, 4294901760
      %v299 = vsub.f32 %v163, %v298
      %v300 = vand.u32 %v299, 4294901760
      %v301 = vsub.f32 %v299, %v300
      %v302 = vand.u32 %v301, 4294901760
      %303 = vmatpush1.msra.mxu0 %v302
      %304 = vmatprep.subr.mxu0 0.0
      %v305 = vand.u32 %v164, 4294901760
      %v306 = vsub.f32 %v164, %v305
      %v307 = vand.u32 %v306, 4294901760
      %v308 = vsub.f32 %v306, %v307
      %v309 = vand.u32 %v308, 4294901760
      %310 = vmatpush1.msra.mxu0 %v309
      %311 = vmatprep.subr.mxu0 0.0
      %v312 = vand.u32 %v165, 4294901760
      %v313 = vsub.f32 %v165, %v312
      %v314 = vand.u32 %v313, 4294901760
      %v315 = vsub.f32 %v313, %v314
      %v316 = vand.u32 %v315, 4294901760
      %317 = vmatpush1.msra.mxu0 %v316
      %318 = vmatprep.subr.mxu0 0.0
      %v319 = vand.u32 %v166, 4294901760
      %v320 = vsub.f32 %v166, %v319
      %v321 = vand.u32 %v320, 4294901760
      %v322 = vsub.f32 %v320, %v321
      %v323 = vand.u32 %v322, 4294901760
      %324 = vmatpush1.msra.mxu0 %v323
      %325 = vmatprep.subr.mxu0 0.0
      %v326 = vand.u32 %v167, 4294901760
      %v327 = vsub.f32 %v167, %v326
      %v328 = vand.u32 %v327, 4294901760
      %v329 = vsub.f32 %v327, %v328
      %v330 = vand.u32 %v329, 4294901760
      %331 = vmatpush1.msra.mxu0 %v330
      %332 = vmatprep.subr.mxu0 0.0
      %v333 = vand.u32 %v168, 4294901760
      %v334 = vsub.f32 %v168, %v333
      %v335 = vand.u32 %v334, 4294901760
      %v336 = vsub.f32 %v334, %v335
      %v337 = vand.u32 %v336, 4294901760
      %338 = vmatpush1.msra.mxu0 %v337
      %339 = vmatprep.subr.mxu0 0.0
      %v340 = vand.u32 %v169, 4294901760
      %v341 = vsub.f32 %v169, %v340
      %v342 = vand.u32 %v341, 4294901760
      %v343 = vsub.f32 %v341, %v342
      %v344 = vand.u32 %v343, 4294901760
      %345 = vmatpush1.msra.mxu0 %v344
      %346 = vmatprep.subr.mxu0 0.0
      %v347 = vand.u32 %v170, 4294901760
      %v348 = vsub.f32 %v170, %v347
      %v349 = vand.u32 %v348, 4294901760
      %v350 = vsub.f32 %v348, %v349
      %v351 = vand.u32 %v350, 4294901760
      %352 = vmatpush1.msra.mxu0 %v351
      %353 = vmatprep.subr.mxu0 0.0
      %354 = vmatpush1.msra.mxu0 0.0
      %355 = vmatprep.subr.mxu0 0.0
      %356 = vmatpush1.msra.mxu0 0.0
      %357 = vmatprep.subr.mxu0 0.0
      %358 = vmatpush1.msra.mxu0 0.0
      %359 = vmatprep.subr.mxu0 0.0
      %360 = vmatpush1.msra.mxu0 0.0
      %361 = vmatprep.subr.mxu0 0.0
      %362 = vmatpush1.msra.mxu0 0.0
      %363 = vmatprep.subr.mxu0 0.0
      %364 = vmatpush1.msra.mxu0 0.0
      %365 = vmatprep.subr.mxu0 0.0
      %366 = vmatpush1.msra.mxu0 0.0
      %367 = vmatprep.subr.mxu0 0.0
      %368 = vmatpush1.msra.mxu0 0.0
      %369 = vmatprep.subr.mxu0 0.0
      %370 = vmatpush1.msra.mxu0 0.0
      %371 = vmatprep.subr.mxu0 0.0
      %372 = vmatpush1.msra.mxu0 0.0
      %373 = vmatprep.subr.mxu0 0.0
      %374 = vmatpush1.msra.mxu0 0.0
      %375 = vmatprep.subr.mxu0 0.0
      %376 = vmatpush1.msra.mxu0 0.0
      %377 = vmatprep.subr.mxu0 0.0
      %378 = vmatpush1.msra.mxu0 0.0
      %379 = vmatprep.subr.mxu0 0.0
      %380 = vmatpush1.msra.mxu0 0.0
      %381 = vmatprep.subr.mxu0 0.0
      %382 = vmatpush1.msra.mxu0 0.0
      %383 = vmatprep.subr.mxu0 0.0
      %384 = vmatpush1.msra.mxu0 0.0
      %385 = vmatprep.subr.mxu0 0.0
      %386 = vmatpush1.msra.mxu0 0.0
      %387 = vmatprep.subr.mxu0 0.0
      %388 = vmatpush1.msra.mxu0 0.0
      %389 = vmatprep.subr.mxu0 0.0
      %390 = vmatpush1.msra.mxu0 0.0
      %391 = vmatprep.subr.mxu0 0.0
      %392 = vmatpush1.msra.mxu0 0.0
      %393 = vmatprep.subr.mxu0 0.0
      %394 = vmatpush1.msra.mxu0 0.0
      %395 = vmatprep.subr.mxu0 0.0
      %396 = vmatpush1.msra.mxu0 0.0
      %397 = vmatprep.subr.mxu0 0.0
      %398 = vmatpush1.msra.mxu0 0.0
      %399 = vmatprep.subr.mxu0 0.0
      %400 = vmatpush1.msra.mxu0 0.0
      %401 = vmatprep.mubr.f32.mxu0 0.0
      %v402 = vand.u32 %v173, 4294901760
      %403 = vmatmul.mubr.f32.gmra.mrb[0].mxu0 %v402
      %v404 = vpop.f32.mrb[0].mxu0
      %v405 = vadd.f32 %v264, %v404
      %v406 = vpop.f32.mrb[0].mxu0
      %407 = vmatprep.mubr.f32.mxu0 0.0
      %v408 = vand.u32 %v176, 4294901760
      %409 = vmatmul.mubr.f32.gmra.mrb[0].mxu0 %v408
      %v410 = vpop.f32.mrb[0].mxu0
      %v411 = vadd.f32 %v274, %v410
      %v412 = vpop.f32.mrb[0].mxu0
      %413 = vmatprep.mubr.f32.mxu0 0.0
      %v414 = vand.u32 %v179, 4294901760
      %415 = vmatmul.mubr.f32.gmra.mrb[0].mxu0 %v414
      %v416 = vpop.f32.mrb[0].mxu0
      %v417 = vadd.f32 %v284, %v416
      %v418 = vpop.f32.mrb[0].mxu0
      %419 = vmatprep.mubr.f32.mxu0 0.0
      %v420 = vand.u32 %v182, 4294901760
      %421 = vmatmul.mubr.f32.gmra.mrb[0].mxu0 %v420
      %v422 = vpop.f32.mrb[0].mxu0
      %v423 = vadd.f32 %v294, %v422
      %v424 = vpop.f32.mrb[0].mxu0
      %425 = vdwg.mxu0
      %426 = vmatprep.subr.mxu0 0.0
      %v427 = vand.u32 %v163, 4294901760
      %v428 = vsub.f32 %v163, %v427
      %429 = vmatpush1.msra.mxu0 %v428
      %430 = vmatprep.subr.mxu0 0.0
      %v431 = vand.u32 %v164, 4294901760
      %v432 = vsub.f32 %v164, %v431
      %433 = vmatpush1.msra.mxu0 %v432
      %434 = vmatprep.subr.mxu0 0.0
      %v435 = vand.u32 %v165, 4294901760
      %v436 = vsub.f32 %v165, %v435
      %437 = vmatpush1.msra.mxu0 %v436
      %438 = vmatprep.subr.mxu0 0.0
      %v439 = vand.u32 %v166, 4294901760
      %v440 = vsub.f32 %v166, %v439
      %441 = vmatpush1.msra.mxu0 %v440
      %442 = vmatprep.subr.mxu0 0.0
      %v443 = vand.u32 %v167, 4294901760
      %v444 = vsub.f32 %v167, %v443
      %445 = vmatpush1.msra.mxu0 %v444
      %446 = vmatprep.subr.mxu0 0.0
      %v447 = vand.u32 %v168, 4294901760
      %v448 = vsub.f32 %v168, %v447
      %449 = vmatpush1.msra.mxu0 %v448
      %450 = vmatprep.subr.mxu0 0.0
      %v451 = vand.u32 %v169, 4294901760
      %v452 = vsub.f32 %v169, %v451
      %453 = vmatpush1.msra.mxu0 %v452
      %454 = vmatprep.subr.mxu0 0.0
      %v455 = vand.u32 %v170, 4294901760
      %v456 = vsub.f32 %v170, %v455
      %457 = vmatpush1.msra.mxu0 %v456
      %458 = vmatprep.subr.mxu0 0.0
      %459 = vmatpush1.msra.mxu0 0.0
      %460 = vmatprep.subr.mxu0 0.0
      %461 = vmatpush1.msra.mxu0 0.0
      %462 = vmatprep.subr.mxu0 0.0
      %463 = vmatpush1.msra.mxu0 0.0
      %464 = vmatprep.subr.mxu0 0.0
      %465 = vmatpush1.msra.mxu0 0.0
      %466 = vmatprep.subr.mxu0 0.0
      %467 = vmatpush1.msra.mxu0 0.0
      %468 = vmatprep.subr.mxu0 0.0
      %469 = vmatpush1.msra.mxu0 0.0
      %470 = vmatprep.subr.mxu0 0.0
      %471 = vmatpush1.msra.mxu0 0.0
      %472 = vmatprep.subr.mxu0 0.0
      %473 = vmatpush1.msra.mxu0 0.0
      %474 = vmatprep.subr.mxu0 0.0
      %475 = vmatpush1.msra.mxu0 0.0
      %476 = vmatprep.subr.mxu0 0.0
      %477 = vmatpush1.msra.mxu0 0.0
      %478 = vmatprep.subr.mxu0 0.0
      %479 = vmatpush1.msra.mxu0 0.0
      %480 = vmatprep.subr.mxu0 0.0
      %481 = vmatpush1.msra.mxu0 0.0
      %482 = vmatprep.subr.mxu0 0.0
      %483 = vmatpush1.msra.mxu0 0.0
      %484 = vmatprep.subr.mxu0 0.0
      %485 = vmatpush1.msra.mxu0 0.0
      %486 = vmatprep.subr.mxu0 0.0
      %487 = vmatpush1.msra.mxu0 0.0
      %488 = vmatprep.subr.mxu0 0.0
      %489 = vmatpush1.msra.mxu0 0.0
      %490 = vmatprep.subr.mxu0 0.0
      %491 = vmatpush1.msra.mxu0 0.0
      %492 = vmatprep.subr.mxu0 0.0
      %493 = vmatpush1.msra.mxu0 0.0
      %494 = vmatprep.subr.mxu0 0.0
      %495 = vmatpush1.msra.mxu0 0.0
      %496 = vmatprep.subr.mxu0 0.0
      %497 = vmatpush1.msra.mxu0 0.0
      %498 = vmatprep.subr.mxu0 0.0
      %499 = vmatpush1.msra.mxu0 0.0
      %500 = vmatprep.subr.mxu0 0.0
      %501 = vmatpush1.msra.mxu0 0.0
      %502 = vmatprep.subr.mxu0 0.0
      %503 = vmatpush1.msra.mxu0 0.0
      %504 = vmatprep.subr.mxu0 0.0
      %505 = vmatpush1.msra.mxu0 0.0
      %506 = vmatprep.mubr.f32.mxu0 0.0
      %v507 = vand.u32 %v173, 4294901760
      %v508 = vsub.f32 %v173, %v507
      %509 = vmatmul.mubr.f32.gmra.mrb[0].mxu0 %v508
      %v510 = vpop.f32.mrb[0].mxu0
      %v511 = vadd.f32 %v405, %v510
      %v512 = vpop.f32.mrb[0].mxu0
      %513 = vmatprep.mubr.f32.mxu0 0.0
      %v514 = vand.u32 %v176, 4294901760
      %v515 = vsub.f32 %v176, %v514
      %516 = vmatmul.mubr.f32.gmra.mrb[0].mxu0 %v515
      %v517 = vpop.f32.mrb[0].mxu0
      %v518 = vadd.f32 %v411, %v517
      %v519 = vpop.f32.mrb[0].mxu0
      %520 = vmatprep.mubr.f32.mxu0 0.0
      %v521 = vand.u32 %v179, 4294901760
      %v522 = vsub.f32 %v179, %v521
      %523 = vmatmul.mubr.f32.gmra.mrb[0].mxu0 %v522
      %v524 = vpop.f32.mrb[0].mxu0
      %v525 = vadd.f32 %v417, %v524
      %v526 = vpop.f32.mrb[0].mxu0
      %527 = vmatprep.mubr.f32.mxu0 0.0
      %v528 = vand.u32 %v182, 4294901760
      %v529 = vsub.f32 %v182, %v528
      %530 = vmatmul.mubr.f32.gmra.mrb[0].mxu0 %v529
      %v531 = vpop.f32.mrb[0].mxu0
      %v532 = vadd.f32 %v423, %v531
      %v533 = vpop.f32.mrb[0].mxu0
      %534 = vdwg.mxu0
      %535 = vmatprep.subr.mxu0 0.0
      %v536 = vand.u32 %v163, 4294901760
      %537 = vmatpush1.msra.mxu0 %v536
      %538 = vmatprep.subr.mxu0 0.0
      %v539 = vand.u32 %v164, 4294901760
      %540 = vmatpush1.msra.mxu0 %v539
      %541 = vmatprep.subr.mxu0 0.0
      %v542 = vand.u32 %v165, 4294901760
      %543 = vmatpush1.msra.mxu0 %v542
      %544 = vmatprep.subr.mxu0 0.0
      %v545 = vand.u32 %v166, 4294901760
      %546 = vmatpush1.msra.mxu0 %v545
      %547 = vmatprep.subr.mxu0 0.0
      %v548 = vand.u32 %v167, 4294901760
      %549 = vmatpush1.msra.mxu0 %v548
      %550 = vmatprep.subr.mxu0 0.0
      %v551 = vand.u32 %v168, 4294901760
      %552 = vmatpush1.msra.mxu0 %v551
      %553 = vmatprep.subr.mxu0 0.0
      %v554 = vand.u32 %v169, 4294901760
      %555 = vmatpush1.msra.mxu0 %v554
      %556 = vmatprep.subr.mxu0 0.0
      %v557 = vand.u32 %v170, 4294901760
      %558 = vmatpush1.msra.mxu0 %v557
      %559 = vmatprep.subr.mxu0 0.0
      %560 = vmatpush1.msra.mxu0 0.0
      %561 = vmatprep.subr.mxu0 0.0
      %562 = vmatpush1.msra.mxu0 0.0
      %563 = vmatprep.subr.mxu0 0.0
      %564 = vmatpush1.msra.mxu0 0.0
      %565 = vmatprep.subr.mxu0 0.0
      %566 = vmatpush1.msra.mxu0 0.0
      %567 = vmatprep.subr.mxu0 0.0
      %568 = vmatpush1.msra.mxu0 0.0
      %569 = vmatprep.subr.mxu0 0.0
      %570 = vmatpush1.msra.mxu0 0.0
      %571 = vmatprep.subr.mxu0 0.0
      %572 = vmatpush1.msra.mxu0 0.0
      %573 = vmatprep.subr.mxu0 0.0
      %574 = vmatpush1.msra.mxu0 0.0
      %575 = vmatprep.subr.mxu0 0.0
      %576 = vmatpush1.msra.mxu0 0.0
      %577 = vmatprep.subr.mxu0 0.0
      %578 = vmatpush1.msra.mxu0 0.0
      %579 = vmatprep.subr.mxu0 0.0
      %580 = vmatpush1.msra.mxu0 0.0
      %581 = vmatprep.subr.mxu0 0.0
      %582 = vmatpush1.msra.mxu0 0.0
      %583 = vmatprep.subr.mxu0 0.0
      %584 = vmatpush1.msra.mxu0 0.0
      %585 = vmatprep.subr.mxu0 0.0
      %586 = vmatpush1.msra.mxu0 0.0
      %587 = vmatprep.subr.mxu0 0.0
      %588 = vmatpush1.msra.mxu0 0.0
      %589 = vmatprep.subr.mxu0 0.0
      %590 = vmatpush1.msra.mxu0 0.0
      %591 = vmatprep.subr.mxu0 0.0
      %592 = vmatpush1.msra.mxu0 0.0
      %593 = vmatprep.subr.mxu0 0.0
      %594 = vmatpush1.msra.mxu0 0.0
      %595 = vmatprep.subr.mxu0 0.0
      %596 = vmatpush1.msra.mxu0 0.0
      %597 = vmatprep.subr.mxu0 0.0
      %598 = vmatpush1.msra.mxu0 0.0
      %599 = vmatprep.subr.mxu0 0.0
      %600 = vmatpush1.msra.mxu0 0.0
      %601 = vmatprep.subr.mxu0 0.0
      %602 = vmatpush1.msra.mxu0 0.0
      %603 = vmatprep.subr.mxu0 0.0
      %604 = vmatpush1.msra.mxu0 0.0
      %605 = vmatprep.subr.mxu0 0.0
      %606 = vmatpush1.msra.mxu0 0.0
      %607 = vmatprep.mubr.f32.mxu0 0.0
      %v608 = vand.u32 %v173, 4294901760
      %v609 = vsub.f32 %v173, %v608
      %v610 = vand.u32 %v609, 4294901760
      %611 = vmatmul.mubr.f32.gmra.mrb[0].mxu0 %v610
      %v612 = vpop.f32.mrb[0].mxu0
      %v613 = vadd.f32 %v511, %v612
      %v614 = vpop.f32.mrb[0].mxu0
      %615 = vmatprep.mubr.f32.mxu0 0.0
      %v616 = vand.u32 %v176, 4294901760
      %v617 = vsub.f32 %v176, %v616
      %v618 = vand.u32 %v617, 4294901760
      %619 = vmatmul.mubr.f32.gmra.mrb[0].mxu0 %v618
      %v620 = vpop.f32.mrb[0].mxu0
      %v621 = vadd.f32 %v518, %v620
      %v622 = vpop.f32.mrb[0].mxu0
      %623 = vmatprep.mubr.f32.mxu0 0.0
      %v624 = vand.u32 %v179, 4294901760
      %v625 = vsub.f32 %v179, %v624
      %v626 = vand.u32 %v625, 4294901760
      %627 = vmatmul.mubr.f32.gmra.mrb[0].mxu0 %v626
      %v628 = vpop.f32.mrb[0].mxu0
      %v629 = vadd.f32 %v525, %v628
      %v630 = vpop.f32.mrb[0].mxu0
      %631 = vmatprep.mubr.f32.mxu0 0.0
      %v632 = vand.u32 %v182, 4294901760
      %v633 = vsub.f32 %v182, %v632
      %v634 = vand.u32 %v633, 4294901760
      %635 = vmatmul.mubr.f32.gmra.mrb[0].mxu0 %v634
      %v636 = vpop.f32.mrb[0].mxu0
      %v637 = vadd.f32 %v532, %v636
      %v638 = vpop.f32.mrb[0].mxu0
      %639 = vdwg.mxu0
      %640 = vmatprep.subr.mxu0 0.0
      %v641 = vand.u32 %v163, 4294901760
      %v642 = vsub.f32 %v163, %v641
      %v643 = vand.u32 %v642, 4294901760
      %644 = vmatpush1.msra.mxu0 %v643
      %645 = vmatprep.subr.mxu0 0.0
      %v646 = vand.u32 %v164, 4294901760
      %v647 = vsub.f32 %v164, %v646
      %v648 = vand.u32 %v647, 4294901760
      %649 = vmatpush1.msra.mxu0 %v648
      %650 = vmatprep.subr.mxu0 0.0
      %v651 = vand.u32 %v165, 4294901760
      %v652 = vsub.f32 %v165, %v651
      %v653 = vand.u32 %v652, 4294901760
      %654 = vmatpush1.msra.mxu0 %v653
      %655 = vmatprep.subr.mxu0 0.0
      %v656 = vand.u32 %v166, 4294901760
      %v657 = vsub.f32 %v166, %v656
      %v658 = vand.u32 %v657, 4294901760
      %659 = vmatpush1.msra.mxu0 %v658
      %660 = vmatprep.subr.mxu0 0.0
      %v661 = vand.u32 %v167, 4294901760
      %v662 = vsub.f32 %v167, %v661
      %v663 = vand.u32 %v662, 4294901760
      %664 = vmatpush1.msra.mxu0 %v663
      %665 = vmatprep.subr.mxu0 0.0
      %v666 = vand.u32 %v168, 4294901760
      %v667 = vsub.f32 %v168, %v666
      %v668 = vand.u32 %v667, 4294901760
      %669 = vmatpush1.msra.mxu0 %v668
      %670 = vmatprep.subr.mxu0 0.0
      %v671 = vand.u32 %v169, 4294901760
      %v672 = vsub.f32 %v169, %v671
      %v673 = vand.u32 %v672, 4294901760
      %674 = vmatpush1.msra.mxu0 %v673
      %675 = vmatprep.subr.mxu0 0.0
      %v676 = vand.u32 %v170, 4294901760
      %v677 = vsub.f32 %v170, %v676
      %v678 = vand.u32 %v677, 4294901760
      %679 = vmatpush1.msra.mxu0 %v678
      %680 = vmatprep.subr.mxu0 0.0
      %681 = vmatpush1.msra.mxu0 0.0
      %682 = vmatprep.subr.mxu0 0.0
      %683 = vmatpush1.msra.mxu0 0.0
      %684 = vmatprep.subr.mxu0 0.0
      %685 = vmatpush1.msra.mxu0 0.0
      %686 = vmatprep.subr.mxu0 0.0
      %687 = vmatpush1.msra.mxu0 0.0
      %688 = vmatprep.subr.mxu0 0.0
      %689 = vmatpush1.msra.mxu0 0.0
      %690 = vmatprep.subr.mxu0 0.0
      %691 = vmatpush1.msra.mxu0 0.0
      %692 = vmatprep.subr.mxu0 0.0
      %693 = vmatpush1.msra.mxu0 0.0
      %694 = vmatprep.subr.mxu0 0.0
      %695 = vmatpush1.msra.mxu0 0.0
      %696 = vmatprep.subr.mxu0 0.0
      %697 = vmatpush1.msra.mxu0 0.0
      %698 = vmatprep.subr.mxu0 0.0
      %699 = vmatpush1.msra.mxu0 0.0
      %700 = vmatprep.subr.mxu0 0.0
      %701 = vmatpush1.msra.mxu0 0.0
      %702 = vmatprep.subr.mxu0 0.0
      %703 = vmatpush1.msra.mxu0 0.0
      %704 = vmatprep.subr.mxu0 0.0
      %705 = vmatpush1.msra.mxu0 0.0
      %706 = vmatprep.subr.mxu0 0.0
      %707 = vmatpush1.msra.mxu0 0.0
      %708 = vmatprep.subr.mxu0 0.0
      %709 = vmatpush1.msra.mxu0 0.0
      %710 = vmatprep.subr.mxu0 0.0
      %711 = vmatpush1.msra.mxu0 0.0
      %712 = vmatprep.subr.mxu0 0.0
      %713 = vmatpush1.msra.mxu0 0.0
      %714 = vmatprep.subr.mxu0 0.0
      %715 = vmatpush1.msra.mxu0 0.0
      %716 = vmatprep.subr.mxu0 0.0
      %717 = vmatpush1.msra.mxu0 0.0
      %718 = vmatprep.subr.mxu0 0.0
      %719 = vmatpush1.msra.mxu0 0.0
      %720 = vmatprep.subr.mxu0 0.0
      %721 = vmatpush1.msra.mxu0 0.0
      %722 = vmatprep.subr.mxu0 0.0
      %723 = vmatpush1.msra.mxu0 0.0
      %724 = vmatprep.subr.mxu0 0.0
      %725 = vmatpush1.msra.mxu0 0.0
      %726 = vmatprep.subr.mxu0 0.0
      %727 = vmatpush1.msra.mxu0 0.0
      %728 = vmatprep.mubr.f32.mxu0 0.0
      %v729 = vand.u32 %v173, 4294901760
      %730 = vmatmul.mubr.f32.gmra.mrb[0].mxu0 %v729
      %v731 = vpop.f32.mrb[0].mxu0
      %v732 = vadd.f32 %v613, %v731
      %v733 = vpop.f32.mrb[0].mxu0
      %734 = vmatprep.mubr.f32.mxu0 0.0
      %v735 = vand.u32 %v176, 4294901760
      %736 = vmatmul.mubr.f32.gmra.mrb[0].mxu0 %v735
      %v737 = vpop.f32.mrb[0].mxu0
      %v738 = vadd.f32 %v621, %v737
      %v739 = vpop.f32.mrb[0].mxu0
      %740 = vmatprep.mubr.f32.mxu0 0.0
      %v741 = vand.u32 %v179, 4294901760
      %742 = vmatmul.mubr.f32.gmra.mrb[0].mxu0 %v741
      %v743 = vpop.f32.mrb[0].mxu0
      %v744 = vadd.f32 %v629, %v743
      %v745 = vpop.f32.mrb[0].mxu0
      %746 = vmatprep.mubr.f32.mxu0 0.0
      %v747 = vand.u32 %v182, 4294901760
      %748 = vmatmul.mubr.f32.gmra.mrb[0].mxu0 %v747
      %v749 = vpop.f32.mrb[0].mxu0
      %v750 = vadd.f32 %v637, %v749
      %v751 = vpop.f32.mrb[0].mxu0
      %752 = vdwg.mxu0
      %753 = vmatprep.subr.mxu0 0.0
      %v754 = vand.u32 %v163, 4294901760
      %755 = vmatpush1.msra.mxu0 %v754
      %756 = vmatprep.subr.mxu0 0.0
      %v757 = vand.u32 %v164, 4294901760
      %758 = vmatpush1.msra.mxu0 %v757
      %759 = vmatprep.subr.mxu0 0.0
      %v760 = vand.u32 %v165, 4294901760
      %761 = vmatpush1.msra.mxu0 %v760
      %762 = vmatprep.subr.mxu0 0.0
      %v763 = vand.u32 %v166, 4294901760
      %764 = vmatpush1.msra.mxu0 %v763
      %765 = vmatprep.subr.mxu0 0.0
      %v766 = vand.u32 %v167, 4294901760
      %767 = vmatpush1.msra.mxu0 %v766
      %768 = vmatprep.subr.mxu0 0.0
      %v769 = vand.u32 %v168, 4294901760
      %770 = vmatpush1.msra.mxu0 %v769
      %771 = vmatprep.subr.mxu0 0.0
      %v772 = vand.u32 %v169, 4294901760
      %773 = vmatpush1.msra.mxu0 %v772
      %774 = vmatprep.subr.mxu0 0.0
      %v775 = vand.u32 %v170, 4294901760
      %776 = vmatpush1.msra.mxu0 %v775
      %777 = vmatprep.subr.mxu0 0.0
      %778 = vmatpush1.msra.mxu0 0.0
      %779 = vmatprep.subr.mxu0 0.0
      %780 = vmatpush1.msra.mxu0 0.0
      %781 = vmatprep.subr.mxu0 0.0
      %782 = vmatpush1.msra.mxu0 0.0
      %783 = vmatprep.subr.mxu0 0.0
      %784 = vmatpush1.msra.mxu0 0.0
      %785 = vmatprep.subr.mxu0 0.0
      %786 = vmatpush1.msra.mxu0 0.0
      %787 = vmatprep.subr.mxu0 0.0
      %788 = vmatpush1.msra.mxu0 0.0
      %789 = vmatprep.subr.mxu0 0.0
      %790 = vmatpush1.msra.mxu0 0.0
      %791 = vmatprep.subr.mxu0 0.0
      %792 = vmatpush1.msra.mxu0 0.0
      %793 = vmatprep.subr.mxu0 0.0
      %794 = vmatpush1.msra.mxu0 0.0
      %795 = vmatprep.subr.mxu0 0.0
      %796 = vmatpush1.msra.mxu0 0.0
      %797 = vmatprep.subr.mxu0 0.0
      %798 = vmatpush1.msra.mxu0 0.0
      %799 = vmatprep.subr.mxu0 0.0
      %800 = vmatpush1.msra.mxu0 0.0
      %801 = vmatprep.subr.mxu0 0.0
      %802 = vmatpush1.msra.mxu0 0.0
      %803 = vmatprep.subr.mxu0 0.0
      %804 = vmatpush1.msra.mxu0 0.0
      %805 = vmatprep.subr.mxu0 0.0
      %806 = vmatpush1.msra.mxu0 0.0
      %807 = vmatprep.subr.mxu0 0.0
      %808 = vmatpush1.msra.mxu0 0.0
      %809 = vmatprep.subr.mxu0 0.0
      %810 = vmatpush1.msra.mxu0 0.0
      %811 = vmatprep.subr.mxu0 0.0
      %812 = vmatpush1.msra.mxu0 0.0
      %813 = vmatprep.subr.mxu0 0.0
      %814 = vmatpush1.msra.mxu0 0.0
      %815 = vmatprep.subr.mxu0 0.0
      %816 = vmatpush1.msra.mxu0 0.0
      %817 = vmatprep.subr.mxu0 0.0
      %818 = vmatpush1.msra.mxu0 0.0
      %819 = vmatprep.subr.mxu0 0.0
      %820 = vmatpush1.msra.mxu0 0.0
      %821 = vmatprep.subr.mxu0 0.0
      %822 = vmatpush1.msra.mxu0 0.0
      %823 = vmatprep.subr.mxu0 0.0
      %824 = vmatpush1.msra.mxu0 0.0
      %825 = vmatprep.mubr.f32.mxu0 0.0
      %v826 = vand.u32 %v173, 4294901760
      %827 = vmatmul.mubr.f32.gmra.mrb[0].mxu0 %v826
      %v828 = vpop.f32.mrb[0].mxu0
      %v829 = vadd.f32 %v732, %v828
      %v830 = vpop.f32.mrb[0].mxu0
      %831 = vmatprep.mubr.f32.mxu0 0.0
      %v832 = vand.u32 %v176, 4294901760
      %833 = vmatmul.mubr.f32.gmra.mrb[0].mxu0 %v832
      %v834 = vpop.f32.mrb[0].mxu0
      %v835 = vadd.f32 %v738, %v834
      %v836 = vpop.f32.mrb[0].mxu0
      %837 = vmatprep.mubr.f32.mxu0 0.0
      %v838 = vand.u32 %v179, 4294901760
      %839 = vmatmul.mubr.f32.gmra.mrb[0].mxu0 %v838
      %v840 = vpop.f32.mrb[0].mxu0
      %v841 = vadd.f32 %v744, %v840
      %v842 = vpop.f32.mrb[0].mxu0
      %843 = vmatprep.mubr.f32.mxu0 0.0
      %v844 = vand.u32 %v182, 4294901760
      %845 = vmatmul.mubr.f32.gmra.mrb[0].mxu0 %v844
      %v846 = vpop.f32.mrb[0].mxu0
      %v847 = vadd.f32 %v750, %v846
      %v848 = vpop.f32.mrb[0].mxu0
      %849 = vdwg.mxu0
      %v850 = vmax.f32 %v829, 0.0
      %v851 = vmax.f32 %v835, 0.0
      %v852 = vmax.f32 %v841, 0.0
      %v853 = vmax.f32 %v847, 0.0
      %vm854 = vcmask 261120
      %855 = vst.msk [vmem:[%s145] sm:$0xff] %vm854, %v850
      %856 = vst.msk [vmem:[%s145 + $0x8] sm:$0xff] %vm854, %v851
      %857 = vst.msk [vmem:[%s145 + $0x10] sm:$0xff] %vm854, %v852
      %858 = vst.msk [vmem:[%s145 + $0x18] sm:$0xff] %vm854, %v853
      %s859 = smul.u32 4, %s13
      %p860 = scmp.lt.s32.totalorder %s859, 15
      %s861 = scalar_select %p860, %s859, 15
      %s862 = smul.addr %s861, 8
      %s863 = scalar_lea.vmem %s2, %s862
      // Predicated region
      $region29: #{tpu_custom_call.1} parent=27 // pred_check
        %p864 = pneg %p78
      $region30: #{tpu_custom_call.1} parent=27 // pred_check_branch
        %866 = sbr.rel (%p864) target = $region32
      $region31: #{tpu_custom_call.1} parent=27 // pred_region
        %s867 = smul.u32 4, %s13
      $region32: #{tpu_custom_call.1} parent=27 // pred_fallthru
        _
    $region28: #{tpu_custom_call.1} parent=5 // pred_fallthru
      _
    %p868 = scmp.le.s32.totalorder 2, %s8
    // Predicated region
    $region33: #{tpu_custom_call.1} parent=5 // pred_check
      %p869 = pneg %p868
    $region34: #{tpu_custom_call.1} parent=5 // pred_check_branch
      %871 = sbr.rel (%p869) target = $region36
    $region35: #{tpu_custom_call.1} parent=5 // pred_region
      %s872 = ssub.s32 %s8, 2
      // Predicated region
      $region37: #{tpu_custom_call.1} parent=35 // pred_check
        %p873 = pneg %p84
      $region38: #{tpu_custom_call.1} parent=35 // pred_check_branch
        %875 = sbr.rel (%p873) target = $region40
      $region39: #{tpu_custom_call.1} parent=35 // pred_region
        %s876 = smul.u32 4, %s14
        %p877 = scmp.lt.s32.totalorder %s876, 15
        %s878 = scalar_select %p877, %s876, 15
        %s879 = smul.addr %s878, 8
        %s880 = scalar_lea.vmem %s2, %s879
      $region40: #{tpu_custom_call.1} parent=35 // pred_fallthru
        _
    $region36: #{tpu_custom_call.1} parent=5 // pred_fallthru
      _
  $region6: #{tpu_custom_call.1} parent=0 // loop_footer
    %s12 = sadd.s32 1, %s8
  $region7: #{tpu_custom_call.1} parent=0 // loop_footer_branch
    %7 = sbr.rel target = $region3
  $region8: #{tpu_custom_call.1} parent=0 // loop_exit
    _

</llo_original>
